<compile_context>
chip_gen: v7x
topology: tpu7x:2x2x1
jax: 0.10.0
libtpu: 0.0.40
codegen_flags: <defaults>
</compile_context>

<pallas_src>
import jax
import jax.numpy as jnp
import numpy as np
from jax.experimental import pallas as pl
from jax.experimental.pallas import tpu as pltpu


def stgc_kernel(x_ref, adj_ref, p_ref, out_ref):
    """Whole forward pass; all operands resident in VMEM, no grid.

    Param slab layout (rows x lanes, lane width = H):
      rows [0, H)        : W2 (H, O) in lanes [0, O)        (8-aligned start)
      rows [H, H+F)      : W1 (F, H)
      row   H+F          : b1 (1, H)
      row   H+F+1        : b2 (1, O) in lanes [0, O)
    """
    N, F = x_ref.shape
    H = p_ref.shape[1]
    O = out_ref.shape[1]

    w2 = p_ref[0:H, 0:O]                       # (H, O)
    w1 = p_ref[H:H + F, :]                     # (F, H)
    b1 = p_ref[H + F:H + F + 1, :]             # (1, H)
    b2 = p_ref[H + F + 1:H + F + 2, 0:O]       # (1, O)

    # gc1 + ReLU: relu(x @ W1 + b1)
    h = jnp.dot(x_ref[...], w1, preferred_element_type=jnp.float32) + b1
    h = jnp.maximum(h, 0.0)                                             # (N, H)

    # Reassociated: (adj @ h) @ W2 + b2 == adj @ (h @ W2) + b2
    hw2 = jnp.dot(h, w2, preferred_element_type=jnp.float32)            # (N, O)
    y = jnp.dot(adj_ref[...], hw2, preferred_element_type=jnp.float32) + b2

    # sigmoid
    out_ref[...] = pl.reciprocal(1.0 + jnp.exp(-y), approx=False)       # (N, O)


def pack_params(w1, b1, w2, b2):
    """Pack (W1 (F,H), b1 (H,), W2 (H,O), b2 (O,)) into one (H+F+2, H) f32 slab.

    Weights are the PyTorch nn.Linear weights pre-transposed once (torch stores
    (out, in); the kernel wants (in, out)).  Done once per model, not per call.
    """
    F, H = w1.shape
    O = w2.shape[1]
    slab = jnp.zeros((H + F + 2, H), jnp.float32)
    slab = slab.at[0:H, 0:O].set(w2)
    slab = slab.at[H:H + F, :].set(w1)
    slab = slab.at[H + F, :].set(b1)
    slab = slab.at[H + F + 1, 0:O].set(b2)
    return slab


def spatio_temporal_graph_convolution(x, adj, param_slab, *, output_dim):
    """x: (N, F) f32, adj: (N, N) f32, param_slab: (H+F+2, H) f32 from pack_params."""
    N = x.shape[0]
    vmem = pl.BlockSpec(memory_space=pltpu.MemorySpace.VMEM)
    return pl.pallas_call(
        stgc_kernel,
        out_shape=jax.ShapeDtypeStruct((N, output_dim), jnp.float32),
        in_specs=[vmem, vmem, vmem],   # x, adj, param slab: whole arrays in VMEM
        out_specs=vmem,
    )(x, adj, param_slab)


def ref_forward(x, adj, params):
    """Pure-JAX reference of the same forward pass, for correctness checking."""
    w1, b1, w2, b2 = params
    hi = jax.lax.Precision.HIGHEST
    h = jnp.maximum(jnp.dot(x, w1, precision=hi) + b1, 0.0)
    g = jnp.dot(adj, h, precision=hi)
    z = jnp.dot(g, w2, precision=hi) + b2
    return 1.0 / (1.0 + jnp.exp(-z))


if __name__ == "__main__":
    # Shapes consistent with the module: hidden_dim=64, temporal_horizon=5,
    # num_features=1 -> input_dim=5, output_dim=1; N=16 graph nodes.
    N = 16
    num_features, temporal_horizon = 1, 5
    input_dim = num_features * temporal_horizon   # 5
    hidden_dim = 64
    output_dim = 1

    key = jax.random.PRNGKey(0)
    ks = jax.random.split(key, 6)

    x = jax.random.normal(ks[0], (N, input_dim), jnp.float32)

    # adjacency built from synthetic positive route distances: 1 / (d + eps)
    route_distances = jax.random.uniform(ks[1], (N, N), jnp.float32, 1.0, 10.0)
    adj = 1.0 / (route_distances + 1e-6)

    scale = 0.1
    # nn.Linear weights, already transposed to (in, out) for the kernel.
    w1 = scale * jax.random.normal(ks[2], (input_dim, hidden_dim), jnp.float32)
    b1 = scale * jax.random.normal(ks[3], (hidden_dim,), jnp.float32)
    w2 = scale * jax.random.normal(ks[4], (hidden_dim, output_dim), jnp.float32)
    b2 = scale * jax.random.normal(ks[5], (output_dim,), jnp.float32)

    param_slab = pack_params(w1, b1, w2, b2)

    y = jax.block_until_ready(
        spatio_temporal_graph_convolution(x, adj, param_slab, output_dim=output_dim))
    y_ref = jax.block_until_ready(ref_forward(x, adj, (w1, b1, w2, b2)))
    np.testing.assert_allclose(np.asarray(y), np.asarray(y_ref), rtol=1e-5, atol=1e-5)

    print("KERNEL_OK")
</pallas_src>

<mosaic_0001>
module attributes {stable_mosaic.version = 11 : i64} {
  func.func @stgc_kernel(%arg0: memref<16x5xf32, #tpu.memory_space<vmem>>, %arg1: memref<16x16xf32, #tpu.memory_space<vmem>>, %arg2: memref<71x64xf32, #tpu.memory_space<vmem>>, %arg3: memref<16x1xf32, #tpu.memory_space<vmem>>) attributes {dimension_semantics = [], scalar_prefetch = 0 : i64, scratch_operands = 0 : i64, tpu.core_type = #tpu.core_type<tc>} {
    %c0 = arith.constant 0 : index
    %c0_0 = arith.constant 0 : index
    %0 = vector.load %arg2[%c0, %c0_0] : memref<71x64xf32, #tpu.memory_space<vmem>>, vector<64x1xf32>
    %c64 = arith.constant 64 : index
    %c0_1 = arith.constant 0 : index
    %1 = vector.load %arg2[%c64, %c0_1] : memref<71x64xf32, #tpu.memory_space<vmem>>, vector<5x64xf32>
    %c69 = arith.constant 69 : index
    %c0_2 = arith.constant 0 : index
    %2 = vector.load %arg2[%c69, %c0_2] : memref<71x64xf32, #tpu.memory_space<vmem>>, vector<1x64xf32>
    %c70 = arith.constant 70 : index
    %c0_3 = arith.constant 0 : index
    %3 = vector.load %arg2[%c70, %c0_3] : memref<71x64xf32, #tpu.memory_space<vmem>>, vector<1x1xf32>
    %c0_4 = arith.constant 0 : index
    %c0_5 = arith.constant 0 : index
    %4 = vector.load %arg0[%c0_4, %c0_5] : memref<16x5xf32, #tpu.memory_space<vmem>>, vector<16x5xf32>
    %cst = arith.constant dense<0.000000e+00> : vector<16x64xf32>
    %5 = tpu.matmul %4, %1, %cst {dimension_numbers = #tpu.dot_dimension_numbers<[1], [0], [0], [1], [0, 0, 1, 1], [], []>} : vector<16x5xf32>, vector<5x64xf32>, vector<16x64xf32> -> vector<16x64xf32>
    %6 = vector.broadcast %2 : vector<1x64xf32> to vector<16x64xf32>
    %7 = arith.addf %5, %6 : vector<16x64xf32>
    %cst_6 = arith.constant 0.000000e+00 : f32
    %8 = vector.broadcast %cst_6 : f32 to vector<16x64xf32>
    %9 = arith.maximumf %7, %8 : vector<16x64xf32>
    %cst_7 = arith.constant dense<0.000000e+00> : vector<16x1xf32>
    %10 = tpu.matmul %9, %0, %cst_7 {dimension_numbers = #tpu.dot_dimension_numbers<[1], [0], [0], [1], [0, 0, 1, 1], [], []>} : vector<16x64xf32>, vector<64x1xf32>, vector<16x1xf32> -> vector<16x1xf32>
    %c0_8 = arith.constant 0 : index
    %c0_9 = arith.constant 0 : index
    %11 = vector.load %arg1[%c0_8, %c0_9] : memref<16x16xf32, #tpu.memory_space<vmem>>, vector<16x16xf32>
    %cst_10 = arith.constant dense<0.000000e+00> : vector<16x1xf32>
    %12 = tpu.matmul %11, %10, %cst_10 {dimension_numbers = #tpu.dot_dimension_numbers<[1], [0], [0], [1], [0, 0, 1, 1], [], []>} : vector<16x16xf32>, vector<16x1xf32>, vector<16x1xf32> -> vector<16x1xf32>
    %13 = vector.broadcast %3 : vector<1x1xf32> to vector<16x1xf32>
    %14 = arith.addf %12, %13 : vector<16x1xf32>
    %cst_11 = arith.constant 0.000000e+00 : f32
    %15 = vector.broadcast %cst_11 : f32 to vector<16x1xf32>
    %16 = arith.subf %15, %14 : vector<16x1xf32>
    %17 = math.exp %16 : vector<16x1xf32>
    %cst_12 = arith.constant 1.000000e+00 : f32
    %18 = vector.broadcast %cst_12 : f32 to vector<16x1xf32>
    %19 = arith.addf %18, %17 : vector<16x1xf32>
    %20 = tpu.reciprocal %19 : vector<16x1xf32> -> vector<16x1xf32>
    %c0_13 = arith.constant 0 : index
    %c0_14 = arith.constant 0 : index
    %21 = vector.load %arg3[%c0_13, %c0_14] : memref<16x1xf32, #tpu.memory_space<vmem>>, vector<16x1xf32>
    tpu.vector_store %arg3[%c0_13, %c0_14], %20 {strides = array<i32>} : memref<16x1xf32, #tpu.memory_space<vmem>>, vector<16x1xf32>,
    return
  }
}

</mosaic_0001>

<llo_original>
// kernel: tpu_custom_call.1
$region0: #{tpu_custom_call.1}
  #allocation0 [shape = 'u32[]', space=smem, size = 0x4, offset = 0x4, fixed_abs, tag = 'smem constant byte address 0x4 - core index']
  #allocation1 [shape = 'u32[144,128]{1,0:T(1,128)}', space=vmem, size = 0x12000, scoped, tag = 'internal scratch']
  %s0 = inlined_call_operand.vmem [shape: f32[16,5], index: 0, kind: input, shape index: {}]
  %s1 = inlined_call_operand.vmem [shape: f32[16,16], index: 1, kind: input, shape index: {}]
  %s2 = inlined_call_operand.vmem [shape: f32[71,64], index: 2, kind: input, shape index: {}]
  %s3 = inlined_call_operand.vmem [shape: f32[16,1], index: 3, kind: output, shape index: {}]
  %s4 = sld [smem:[#allocation0]]
  $region22: #{tpu_custom_call.1} parent=0
    _
  %s6 = ssub.s32 1, %s4
  %s7 = scalar_select 0, %s6, %s4
  // Predicated region
  $region2: #{tpu_custom_call.1} parent=0 // pred_check
    _
  $region3: #{tpu_custom_call.1} parent=0 // pred_check_branch
    %9 = sbr.rel (0) target = $region5
  $region4: #{tpu_custom_call.1} parent=0 // pred_region
    _
  $region5: #{tpu_custom_call.1} parent=0 // pred_fallthru
    _
  // Predicated region
  $region6: #{tpu_custom_call.1} parent=0 // pred_check
    _
  $region7: #{tpu_custom_call.1} parent=0 // pred_check_branch
    %11 = sbr.rel (0) target = $region9
  $region8: #{tpu_custom_call.1} parent=0 // pred_region
    _
  $region9: #{tpu_custom_call.1} parent=0 // pred_fallthru
    _
  // Predicated region
  $region10: #{tpu_custom_call.1} parent=0 // pred_check
    _
  $region11: #{tpu_custom_call.1} parent=0 // pred_check_branch
    %13 = sbr.rel (0) target = $region13
  $region12: #{tpu_custom_call.1} parent=0 // pred_region
    _
  $region13: #{tpu_custom_call.1} parent=0 // pred_fallthru
    _
  %v14 = vld [vmem:[%s2] sm:$0xff]
  %v15 = vld [vmem:[%s2 + $0x8] sm:$0xff]
  %v16 = vld [vmem:[%s2 + $0x10] sm:$0xff]
  %v17 = vld [vmem:[%s2 + $0x18] sm:$0xff]
  %v18 = vld [vmem:[%s2 + $0x20] sm:$0xff]
  %v19 = vld [vmem:[%s2 + $0x28] sm:$0xff]
  %v20 = vld [vmem:[%s2 + $0x30] sm:$0xff]
  %v21 = vld [vmem:[%s2 + $0x38] sm:$0xff]
  %v22 = vld [vmem:[%s2 + $0x40] sm:$0x1f]
  %v23 = vld [vmem:[%s2 + $0x45] sm:$0x1]
  %v24 = vld [vmem:[%s2 + $0x46] sm:$0x1]
  %v25 = vld [vmem:[%s0] sm:$0xff]
  %v26 = vld [vmem:[%s0 + $0x8] sm:$0xff]
  %v27 = vlaneseq
  %v28 = vshrl.u32 %v27, 7
  %v29 = vsub.s32 0, %v28
  %v30 = vrot.slane %v23, %v29
  %vm31 = vcmask 39936
  %v33 = vsel %vm31, %v25, 0
  %v36 = vsel %vm31, %v26, 0
  %vm38 = vcmask 1044480
  %v40 = vsel %vm38, %v22, 0
  %42 = vmatprep.subr.mxu0 0.0
  %43 = vmatpush1.msra.mxu0 %v40
  %44 = vmatprep.subr.mxu0 0.0
  %45 = vmatpush1.msra.mxu0 0.0
  %46 = vmatprep.subr.mxu0 0.0
  %47 = vmatpush1.msra.mxu0 0.0
  %48 = vmatprep.subr.mxu0 0.0
  %49 = vmatpush1.msra.mxu0 0.0
  %50 = vmatprep.subr.mxu0 0.0
  %51 = vmatpush1.msra.mxu0 0.0
  %52 = vmatprep.subr.mxu0 0.0
  %53 = vmatpush1.msra.mxu0 0.0
  %54 = vmatprep.subr.mxu0 0.0
  %55 = vmatpush1.msra.mxu0 0.0
  %56 = vmatprep.subr.mxu0 0.0
  %57 = vmatpush1.msra.mxu0 0.0
  %58 = vmatprep.subr.mxu0 0.0
  %59 = vmatpush1.msra.mxu0 0.0
  %60 = vmatprep.subr.mxu0 0.0
  %61 = vmatpush1.msra.mxu0 0.0
  %62 = vmatprep.subr.mxu0 0.0
  %63 = vmatpush1.msra.mxu0 0.0
  %64 = vmatprep.subr.mxu0 0.0
  %65 = vmatpush1.msra.mxu0 0.0
  %66 = vmatprep.subr.mxu0 0.0
  %67 = vmatpush1.msra.mxu0 0.0
  %68 = vmatprep.subr.mxu0 0.0
  %69 = vmatpush1.msra.mxu0 0.0
  %70 = vmatprep.subr.mxu0 0.0
  %71 = vmatpush1.msra.mxu0 0.0
  %72 = vmatprep.subr.mxu0 0.0
  %73 = vmatpush1.msra.mxu0 0.0
  %74 = vmatprep.subr.mxu0 0.0
  %75 = vmatpush1.msra.mxu0 0.0
  %76 = vmatprep.subr.mxu0 0.0
  %77 = vmatpush1.msra.mxu0 0.0
  %78 = vmatprep.subr.mxu0 0.0
  %79 = vmatpush1.msra.mxu0 0.0
  %80 = vmatprep.subr.mxu0 0.0
  %81 = vmatpush1.msra.mxu0 0.0
  %82 = vmatprep.subr.mxu0 0.0
  %83 = vmatpush1.msra.mxu0 0.0
  %84 = vmatprep.subr.mxu0 0.0
  %85 = vmatpush1.msra.mxu0 0.0
  %86 = vmatprep.subr.mxu0 0.0
  %87 = vmatpush1.msra.mxu0 0.0
  %88 = vmatprep.subr.mxu0 0.0
  %89 = vmatpush1.msra.mxu0 0.0
  %90 = vmatprep.subr.mxu0 0.0
  %91 = vmatpush1.msra.mxu0 0.0
  %92 = vmatprep.subr.mxu0 0.0
  %93 = vmatpush1.msra.mxu0 0.0
  %94 = vmatprep.subr.mxu0 0.0
  %95 = vmatpush1.msra.mxu0 0.0
  %96 = vmatprep.subr.mxu0 0.0
  %97 = vmatpush1.msra.mxu0 0.0
  %98 = vmatprep.subr.mxu0 0.0
  %99 = vmatpush1.msra.mxu0 0.0
  %100 = vmatprep.subr.mxu0 0.0
  %101 = vmatpush1.msra.mxu0 0.0
  %102 = vmatprep.subr.mxu0 0.0
  %103 = vmatpush1.msra.mxu0 0.0
  %104 = vmatprep.subr.mxu0 0.0
  %105 = vmatpush1.msra.mxu0 0.0
  %106 = vmatprep.mubr.f32.mxu0 0.0
  %107 = vmatmul.mubr.f32.gmra.mrb[0].mxu0 %v33
  %v108 = vpop.f32.mrb[0].mxu0
  %v109 = vadd.f32 %v30, %v108
  %v110 = vpop.f32.mrb[0].mxu0
  %111 = vmatprep.mubr.f32.mxu0 0.0
  %112 = vmatmul.mubr.f32.gmra.mrb[0].mxu0 %v36
  %v113 = vpop.f32.mrb[0].mxu0
  %v114 = vadd.f32 %v30, %v113
  %v115 = vpop.f32.mrb[0].mxu0
  %116 = vdwg.mxu0
  %v117 = vmax.f32 %v109, 0.0
  %v118 = vmax.f32 %v114, 0.0
  %vm119 = vcmask 523264
  %v121 = vsel %vm119, %v117, 0
  %v124 = vsel %vm119, %v118, 0
  %126 = vmatprep.subr.mxu0 0.0
  %127 = vmatpush1.msra.mxu0 %v14
  %128 = vmatprep.subr.mxu0 0.0
  %129 = vmatpush1.msra.mxu0 %v15
  %130 = vmatprep.subr.mxu0 0.0
  %131 = vmatpush1.msra.mxu0 %v16
  %132 = vmatprep.subr.mxu0 0.0
  %133 = vmatpush1.msra.mxu0 %v17
  %134 = vmatprep.subr.mxu0 0.0
  %135 = vmatpush1.msra.mxu0 %v18
  %136 = vmatprep.subr.mxu0 0.0
  %137 = vmatpush1.msra.mxu0 %v19
  %138 = vmatprep.subr.mxu0 0.0
  %139 = vmatpush1.msra.mxu0 %v20
  %140 = vmatprep.subr.mxu0 0.0
  %141 = vmatpush1.msra.mxu0 %v21
  %142 = vmatprep.subr.mxu0 0.0
  %143 = vmatpush1.msra.mxu0 0.0
  %144 = vmatprep.subr.mxu0 0.0
  %145 = vmatpush1.msra.mxu0 0.0
  %146 = vmatprep.subr.mxu0 0.0
  %147 = vmatpush1.msra.mxu0 0.0
  %148 = vmatprep.subr.mxu0 0.0
  %149 = vmatpush1.msra.mxu0 0.0
  %150 = vmatprep.subr.mxu0 0.0
  %151 = vmatpush1.msra.mxu0 0.0
  %152 = vmatprep.subr.mxu0 0.0
  %153 = vmatpush1.msra.mxu0 0.0
  %154 = vmatprep.subr.mxu0 0.0
  %155 = vmatpush1.msra.mxu0 0.0
  %156 = vmatprep.subr.mxu0 0.0
  %157 = vmatpush1.msra.mxu0 0.0
  %158 = vmatprep.subr.mxu0 0.0
  %159 = vmatpush1.msra.mxu0 0.0
  %160 = vmatprep.subr.mxu0 0.0
  %161 = vmatpush1.msra.mxu0 0.0
  %162 = vmatprep.subr.mxu0 0.0
  %163 = vmatpush1.msra.mxu0 0.0
  %164 = vmatprep.subr.mxu0 0.0
  %165 = vmatpush1.msra.mxu0 0.0
  %166 = vmatprep.subr.mxu0 0.0
  %167 = vmatpush1.msra.mxu0 0.0
  %168 = vmatprep.subr.mxu0 0.0
  %169 = vmatpush1.msra.mxu0 0.0
  %170 = vmatprep.subr.mxu0 0.0
  %171 = vmatpush1.msra.mxu0 0.0
  %172 = vmatprep.subr.mxu0 0.0
  %173 = vmatpush1.msra.mxu0 0.0
  %174 = vmatprep.subr.mxu0 0.0
  %175 = vmatpush1.msra.mxu0 0.0
  %176 = vmatprep.subr.mxu0 0.0
  %177 = vmatpush1.msra.mxu0 0.0
  %178 = vmatprep.subr.mxu0 0.0
  %179 = vmatpush1.msra.mxu0 0.0
  %180 = vmatprep.subr.mxu0 0.0
  %181 = vmatpush1.msra.mxu0 0.0
  %182 = vmatprep.subr.mxu0 0.0
  %183 = vmatpush1.msra.mxu0 0.0
  %184 = vmatprep.subr.mxu0 0.0
  %185 = vmatpush1.msra.mxu0 0.0
  %186 = vmatprep.subr.mxu0 0.0
  %187 = vmatpush1.msra.mxu0 0.0
  %188 = vmatprep.subr.mxu0 0.0
  %189 = vmatpush1.msra.mxu0 0.0
  %190 = vmatprep.mubr.f32.mxu0 0.0
  %191 = vmatmul.mubr.f32.gmra.mrb[0].mxu0 %v121
  %v192 = vpop.f32.mrb[0].mxu0
  %v193 = vadd.f32 0.0, %v192
  %v194 = vpop.f32.mrb[0].mxu0
  %195 = vmatprep.mubr.f32.mxu0 0.0
  %196 = vmatmul.mubr.f32.gmra.mrb[0].mxu0 %v124
  %v197 = vpop.f32.mrb[0].mxu0
  %v198 = vadd.f32 0.0, %v197
  %v199 = vpop.f32.mrb[0].mxu0
  %200 = vdwg.mxu0
  %v201 = vld [vmem:[%s1] sm:$0xff]
  %v202 = vld [vmem:[%s1 + $0x8] sm:$0xff]
  %v203 = vlaneseq
  %v204 = vshrl.u32 %v203, 7
  %v205 = vsub.s32 0, %v204
  %v206 = vrot.slane %v24, %v205
  %vm207 = vcmask 130048
  %v209 = vsel %vm207, %v201, 0
  %v212 = vsel %vm207, %v202, 0
  %214 = vmatprep.subr.mxu0 0.0
  %215 = vmatpush1.msra.mxu0 %v193
  %216 = vmatprep.subr.mxu0 0.0
  %217 = vmatpush1.msra.mxu0 %v198
  %218 = vmatprep.subr.mxu0 0.0
  %219 = vmatpush1.msra.mxu0 0.0
  %220 = vmatprep.subr.mxu0 0.0
  %221 = vmatpush1.msra.mxu0 0.0
  %222 = vmatprep.subr.mxu0 0.0
  %223 = vmatpush1.msra.mxu0 0.0
  %224 = vmatprep.subr.mxu0 0.0
  %225 = vmatpush1.msra.mxu0 0.0
  %226 = vmatprep.subr.mxu0 0.0
  %227 = vmatpush1.msra.mxu0 0.0
  %228 = vmatprep.subr.mxu0 0.0
  %229 = vmatpush1.msra.mxu0 0.0
  %230 = vmatprep.subr.mxu0 0.0
  %231 = vmatpush1.msra.mxu0 0.0
  %232 = vmatprep.subr.mxu0 0.0
  %233 = vmatpush1.msra.mxu0 0.0
  %234 = vmatprep.subr.mxu0 0.0
  %235 = vmatpush1.msra.mxu0 0.0
  %236 = vmatprep.subr.mxu0 0.0
  %237 = vmatpush1.msra.mxu0 0.0
  %238 = vmatprep.subr.mxu0 0.0
  %239 = vmatpush1.msra.mxu0 0.0
  %240 = vmatprep.subr.mxu0 0.0
  %241 = vmatpush1.msra.mxu0 0.0
  %242 = vmatprep.subr.mxu0 0.0
  %243 = vmatpush1.msra.mxu0 0.0
  %244 = vmatprep.subr.mxu0 0.0
  %245 = vmatpush1.msra.mxu0 0.0
  %246 = vmatprep.subr.mxu0 0.0
  %247 = vmatpush1.msra.mxu0 0.0
  %248 = vmatprep.subr.mxu0 0.0
  %249 = vmatpush1.msra.mxu0 0.0
  %250 = vmatprep.subr.mxu0 0.0
  %251 = vmatpush1.msra.mxu0 0.0
  %252 = vmatprep.subr.mxu0 0.0
  %253 = vmatpush1.msra.mxu0 0.0
  %254 = vmatprep.subr.mxu0 0.0
  %255 = vmatpush1.msra.mxu0 0.0
  %256 = vmatprep.subr.mxu0 0.0
  %257 = vmatpush1.msra.mxu0 0.0
  %258 = vmatprep.subr.mxu0 0.0
  %259 = vmatpush1.msra.mxu0 0.0
  %260 = vmatprep.subr.mxu0 0.0
  %261 = vmatpush1.msra.mxu0 0.0
  %262 = vmatprep.subr.mxu0 0.0
  %263 = vmatpush1.msra.mxu0 0.0
  %264 = vmatprep.subr.mxu0 0.0
  %265 = vmatpush1.msra.mxu0 0.0
  %266 = vmatprep.subr.mxu0 0.0
  %267 = vmatpush1.msra.mxu0 0.0
  %268 = vmatprep.subr.mxu0 0.0
  %269 = vmatpush1.msra.mxu0 0.0
  %270 = vmatprep.subr.mxu0 0.0
  %271 = vmatpush1.msra.mxu0 0.0
  %272 = vmatprep.subr.mxu0 0.0
  %273 = vmatpush1.msra.mxu0 0.0
  %274 = vmatprep.subr.mxu0 0.0
  %275 = vmatpush1.msra.mxu0 0.0
  %276 = vmatprep.subr.mxu0 0.0
  %277 = vmatpush1.msra.mxu0 0.0
  %278 = vmatprep.mubr.f32.mxu0 0.0
  %279 = vmatmul.mubr.f32.gmra.mrb[0].mxu0 %v209
  %v280 = vpop.f32.mrb[0].mxu0
  %v281 = vadd.f32 %v206, %v280
  %v282 = vpop.f32.mrb[0].mxu0
  %283 = vmatprep.mubr.f32.mxu0 0.0
  %284 = vmatmul.mubr.f32.gmra.mrb[0].mxu0 %v212
  %v285 = vpop.f32.mrb[0].mxu0
  %v286 = vadd.f32 %v206, %v285
  %v287 = vpop.f32.mrb[0].mxu0
  %288 = vdwg.mxu0
  %v289 = vsub.f32 0.0, %v281
  %v290 = vsub.f32 0.0, %v286
  %v291 = vmul.f32 %v289, 1.442695
  %v292 = vpow.pop %v291
  %v293 = vmul.f32 %v290, 1.442695
  %v294 = vpow.pop %v293
  %v295 = vadd.f32 %v292, 1.0
  %v296 = vadd.f32 %v294, 1.0
  %v297 = vrcp.pop %v295
  %v298 = vrcp.pop %v296
  %vm299 = vcmask 7168
  %300 = vst.msk [vmem:[%s3] sm:$0xff] %vm299, %v297
  %301 = vst.msk [vmem:[%s3 + $0x8] sm:$0xff] %vm299, %v298
  // Predicated region
  $region14: #{tpu_custom_call.1} parent=0 // pred_check
    _
  $region15: #{tpu_custom_call.1} parent=0 // pred_check_branch
    %303 = sbr.rel (0) target = $region17
  $region16: #{tpu_custom_call.1} parent=0 // pred_region
    _
  $region17: #{tpu_custom_call.1} parent=0 // pred_fallthru
    _
  // Predicated region
  $region18: #{tpu_custom_call.1} parent=0 // pred_check
    _
  $region19: #{tpu_custom_call.1} parent=0 // pred_check_branch
    %305 = sbr.rel (0) target = $region21
  $region20: #{tpu_custom_call.1} parent=0 // pred_region
    _
  $region21: #{tpu_custom_call.1} parent=0 // pred_fallthru
    _

</llo_original>
